<compile_context>
chip_gen: v5e
topology: v5e:2x2
jax: 0.10.0
libtpu: 0.0.40
codegen_flags: <defaults>
</compile_context>

<pallas_src>
import jax
import jax.numpy as jnp
from jax import lax
from jax.experimental import pallas as pl
from jax.experimental.pallas import tpu as pltpu


def _backproject_kernel(depth_ref, coef_ref, o_ref):
    # depth_ref: (1, 1, th, W)  depth tile for this (batch, row-tile)
    # coef_ref:  (1, 4, 4)      per-output-row coefficients, columns =
    #                           [cx | cy | cz | cw]; row 3 = (0, 0, 0, 1)
    # o_ref:     (1, 4, th, W)  cam_points tile (single dense store)
    th = depth_ref.shape[2]
    width = depth_ref.shape[3]

    d = depth_ref[...]                                   # (1, 1, th, W)
    coef = coef_ref[...]                                 # (1, 4, 4)

    # Per-output-row coefficients broadcast to (1, 4, 1, 1).
    cx = coef[:, :, 0][:, :, None, None]
    cy = coef[:, :, 1][:, :, None, None]
    cz = coef[:, :, 2][:, :, None, None]
    cw = coef[:, :, 3][:, :, None, None]

    # In-kernel pixel coordinates (== the module's registered pix_coords):
    #   x_i = i %  W  -> lane iota over W
    #   y_i = i // W  -> global row index = row-tile offset + sublane iota
    shape = (1, 1, th, width)
    x = lax.broadcasted_iota(jnp.int32, shape, 3).astype(jnp.float32)
    row = lax.broadcasted_iota(jnp.int32, shape, 2).astype(jnp.float32)
    y = row + (pl.program_id(1) * th).astype(jnp.float32)

    # Pure-VPU broadcast FMAs:
    #   rows 0..2: depth * (inv_K row dot [x, y, 1])
    #   row  3   : depth * 0 + 1  == 1   (homogeneous coordinate)
    cam = d * (cx * x + cy * y + cz) + cw                # (1, 4, th, W)
    o_ref[...] = cam.astype(o_ref.dtype)


def _pick_block_rows(B: int, H: int, W: int) -> int:
    """Rows per tile: sublane-dense, VMEM-safe on all generations."""
    # Cap per-tile lanes so the double-buffered working set (depth block,
    # 4-row output block, elementwise temporaries) stays well under v7x's
    # 64 MiB VMEM while amortizing the ~0.35 us per-grid-step overhead.
    max_lanes = 256 * 1024                       # ~4 MiB f32 output block
    th_cap = max(8, (max_lanes // max(W, 1)) // 8 * 8)
    th = H if H <= th_cap else th_cap            # == H, or a multiple of 8
    # v7x megacore: if B == 1, split the row axis so both TCs get work.
    if B == 1 and th == H and H >= 16:
        half = (H // 2) // 8 * 8
        if half >= 8:
            th = half
    return th


@jax.jit
def backproject_depth(depth, inv_K):
    """BackprojectDepth.forward.

    depth: (B, 1, H, W) float32
    inv_K: (B, 4, 4)    float32
    returns cam_points: (B, 4, H*W) float32
    """
    B, _, H, W = depth.shape
    HW = H * W

    depth4 = depth.astype(jnp.float32)                       # (B, 1, H, W)

    # Pack inv_K[:, :3, :3] plus the homogeneous row into one (B, 4, 4)
    # coefficient array: cols 0..2 rows 0..2 = inv_K; col 3 = [0, 0, 0, 1].
    coef = jnp.zeros((B, 4, 4), jnp.float32)
    coef = coef.at[:, :3, :3].set(inv_K.astype(jnp.float32)[:, :3, :3])
    coef = coef.at[:, 3, 3].set(1.0)

    th = _pick_block_rows(B, H, W)
    grid = (B, pl.cdiv(H, th))

    cost = pl.CostEstimate(
        flops=24 * B * HW,                       # 6 FMAs/adds x 4 rows
        transcendentals=0,
        bytes_accessed=4 * (B * HW               # depth read
                            + 16 * B             # coefficients
                            + 4 * B * HW),       # output write
    )

    out4 = pl.pallas_call(
        _backproject_kernel,
        out_shape=jax.ShapeDtypeStruct((B, 4, H, W), jnp.float32),
        grid_spec=pltpu.PrefetchScalarGridSpec(
            num_scalar_prefetch=0,
            grid=grid,
            in_specs=[
                pl.BlockSpec((1, 1, th, W), lambda b, t: (b, 0, t, 0)),  # depth
                pl.BlockSpec((1, 4, 4), lambda b, t: (b, 0, 0)),         # coef
            ],
            out_specs=pl.BlockSpec((1, 4, th, W), lambda b, t: (b, 0, t, 0)),
        ),
        compiler_params=pltpu.CompilerParams(
            dimension_semantics=("parallel", "parallel"),
            vmem_limit_bytes=40 << 20),
        cost_estimate=cost,
    )(depth4, coef)

    # Contiguous, free reshape to the module's (B, 4, H*W) output layout.
    return out4.reshape(B, 4, HW)


def _reference(depth, inv_K):
    """Pure-JAX mirror of the PyTorch module, for validation."""
    B, _, H, W = depth.shape
    xs, ys = jnp.meshgrid(jnp.arange(W, dtype=jnp.float32),
                          jnp.arange(H, dtype=jnp.float32), indexing="xy")
    pix = jnp.stack([xs.reshape(-1), ys.reshape(-1),
                     jnp.ones(H * W, jnp.float32)], axis=0)        # (3, HW)
    pix = jnp.broadcast_to(pix[None], (B, 3, H * W))
    cam = jnp.einsum("bij,bjk->bik", inv_K[:, :3, :3], pix,
                     precision=lax.Precision.HIGHEST)
    cam = depth.reshape(B, 1, -1) * cam
    ones = jnp.ones((B, 1, H * W), jnp.float32)
    return jnp.concatenate([cam, ones], axis=1)


if __name__ == "__main__":
    key = jax.random.PRNGKey(0)
    k_d, k_k = jax.random.split(key)

    B, H, W = 2, 16, 16
    depth = jax.random.uniform(k_d, (B, 1, H, W), jnp.float32,
                               minval=0.1, maxval=10.0)
    inv_K = jax.random.normal(k_k, (B, 4, 4), dtype=jnp.float32)

    out = jax.block_until_ready(backproject_depth(depth, inv_K))
    ref = jax.block_until_ready(_reference(depth, inv_K))

    assert out.shape == (B, 4, H * W)
    assert jnp.allclose(out, ref, atol=1e-4, rtol=1e-5), "mismatch vs reference"

    print("KERNEL_OK")
</pallas_src>

<mosaic_0001>
module attributes {stable_mosaic.version = 11 : i64} {
  func.func @_backproject_kernel(%arg0: i32, %arg1: i32, %arg2: memref<1x1x16x16xf32, #tpu.memory_space<vmem>>, %arg3: memref<1x4x4xf32, #tpu.memory_space<vmem>>, %arg4: memref<1x4x16x16xf32, #tpu.memory_space<vmem>>) attributes {dimension_semantics = [#tpu.dimension_semantics<parallel>, #tpu.dimension_semantics<parallel>], iteration_bounds = array<i64: 2, 1>, scalar_prefetch = 0 : i64, scratch_operands = 0 : i64, tpu.core_type = #tpu.core_type<tc>, window_params = [{transform_indices = @transform_0, window_bounds = array<i64: 1, 1, 16, 16>}, {transform_indices = @transform_1, window_bounds = array<i64: 1, 4, 4>}, {transform_indices = @transform_2, window_bounds = array<i64: 1, 4, 16, 16>}]} {
    %c0 = arith.constant 0 : index
    %c0_0 = arith.constant 0 : index
    %c0_1 = arith.constant 0 : index
    %c0_2 = arith.constant 0 : index
    %0 = vector.load %arg2[%c0, %c0_0, %c0_1, %c0_2] : memref<1x1x16x16xf32, #tpu.memory_space<vmem>>, vector<1x1x16x16xf32>
    %c0_3 = arith.constant 0 : index
    %c0_4 = arith.constant 0 : index
    %c0_5 = arith.constant 0 : index
    %1 = vector.load %arg3[%c0_3, %c0_4, %c0_5] : memref<1x4x4xf32, #tpu.memory_space<vmem>>, vector<1x4x4xf32>
    %2 = vector.extract_strided_slice %1 {offsets = [0, 0, 0], sizes = [1, 4, 1], strides = [1, 1, 1]} : vector<1x4x4xf32> to vector<1x4x1xf32>
    %3 = vector.shape_cast %2 : vector<1x4x1xf32> to vector<1x4xf32>
    %4 = vector.shape_cast %3 : vector<1x4xf32> to vector<1x4x1x1xf32>
    %5 = vector.extract_strided_slice %1 {offsets = [0, 0, 1], sizes = [1, 4, 1], strides = [1, 1, 1]} : vector<1x4x4xf32> to vector<1x4x1xf32>
    %6 = vector.shape_cast %5 : vector<1x4x1xf32> to vector<1x4xf32>
    %7 = vector.shape_cast %6 : vector<1x4xf32> to vector<1x4x1x1xf32>
    %8 = vector.extract_strided_slice %1 {offsets = [0, 0, 2], sizes = [1, 4, 1], strides = [1, 1, 1]} : vector<1x4x4xf32> to vector<1x4x1xf32>
    %9 = vector.shape_cast %8 : vector<1x4x1xf32> to vector<1x4xf32>
    %10 = vector.shape_cast %9 : vector<1x4xf32> to vector<1x4x1x1xf32>
    %11 = vector.extract_strided_slice %1 {offsets = [0, 0, 3], sizes = [1, 4, 1], strides = [1, 1, 1]} : vector<1x4x4xf32> to vector<1x4x1xf32>
    %12 = vector.shape_cast %11 : vector<1x4x1xf32> to vector<1x4xf32>
    %13 = vector.shape_cast %12 : vector<1x4xf32> to vector<1x4x1x1xf32>
    %14 = tpu.iota {dimensions = array<i32: 3>} : vector<1x1x16x16xi32>
    %15 = arith.sitofp %14 : vector<1x1x16x16xi32> to vector<1x1x16x16xf32>
    %16 = tpu.iota {dimensions = array<i32: 2>} : vector<1x1x16x16xi32>
    %17 = arith.sitofp %16 : vector<1x1x16x16xi32> to vector<1x1x16x16xf32>
    %c16_i32 = arith.constant 16 : i32
    %18 = arith.muli %arg1, %c16_i32 : i32
    %19 = arith.sitofp %18 : i32 to f32
    %20 = vector.broadcast %19 : f32 to vector<1x1x16x16xf32>
    %21 = arith.addf %17, %20 : vector<1x1x16x16xf32>
    %22 = vector.broadcast %4 : vector<1x4x1x1xf32> to vector<1x4x16x16xf32>
    %23 = vector.broadcast %15 : vector<1x1x16x16xf32> to vector<1x4x16x16xf32>
    %24 = arith.mulf %22, %23 : vector<1x4x16x16xf32>
    %25 = vector.broadcast %7 : vector<1x4x1x1xf32> to vector<1x4x16x16xf32>
    %26 = vector.broadcast %21 : vector<1x1x16x16xf32> to vector<1x4x16x16xf32>
    %27 = arith.mulf %25, %26 : vector<1x4x16x16xf32>
    %28 = arith.addf %24, %27 : vector<1x4x16x16xf32>
    %29 = vector.broadcast %10 : vector<1x4x1x1xf32> to vector<1x4x16x16xf32>
    %30 = arith.addf %28, %29 : vector<1x4x16x16xf32>
    %31 = vector.broadcast %0 : vector<1x1x16x16xf32> to vector<1x4x16x16xf32>
    %32 = arith.mulf %31, %30 : vector<1x4x16x16xf32>
    %33 = vector.broadcast %13 : vector<1x4x1x1xf32> to vector<1x4x16x16xf32>
    %34 = arith.addf %32, %33 : vector<1x4x16x16xf32>
    %c0_6 = arith.constant 0 : index
    %c0_7 = arith.constant 0 : index
    %c0_8 = arith.constant 0 : index
    %c0_9 = arith.constant 0 : index
    %35 = vector.load %arg4[%c0_6, %c0_7, %c0_8, %c0_9] : memref<1x4x16x16xf32, #tpu.memory_space<vmem>>, vector<1x4x16x16xf32>
    tpu.vector_store %arg4[%c0_6, %c0_7, %c0_8, %c0_9], %34 {strides = array<i32>} : memref<1x4x16x16xf32, #tpu.memory_space<vmem>>, vector<1x4x16x16xf32>,
    return
  }
  func.func @transform_0(%arg0: i32, %arg1: i32) -> (i32, i32, i32, i32) {
    %c0_i32 = arith.constant 0 : i32
    %c0_i32_0 = arith.constant 0 : i32
    %c0_i32_1 = arith.constant 0 : i32
    return %arg0, %c0_i32, %arg1, %c0_i32_0 : i32, i32, i32, i32
  }
  func.func @transform_1(%arg0: i32, %arg1: i32) -> (i32, i32, i32) {
    %c0_i32 = arith.constant 0 : i32
    %c0_i32_0 = arith.constant 0 : i32
    %c0_i32_1 = arith.constant 0 : i32
    return %arg0, %c0_i32, %c0_i32_0 : i32, i32, i32
  }
  func.func @transform_2(%arg0: i32, %arg1: i32) -> (i32, i32, i32, i32) {
    %c0_i32 = arith.constant 0 : i32
    %c0_i32_0 = arith.constant 0 : i32
    %c0_i32_1 = arith.constant 0 : i32
    return %arg0, %c0_i32, %arg1, %c0_i32_0 : i32, i32, i32, i32
  }
}

</mosaic_0001>

<llo_original>
// kernel: backproject_depth.1
$region0: #{backproject_depth.1}
  #allocation0 [shape = 'u32[]', space=smem, size = 0x4, offset = 0x4, fixed_abs, tag = 'smem constant byte address 0x4 - core index']
  #allocation1 [shape = 'u32[72,128]{1,0:T(1,128)}', space=vmem, size = 0x9000, scoped, tag = 'internal scratch']
  %s0 = inlined_call_operand.hbm [shape: f32[2,1,16,16], index: 0, kind: input, shape index: {}]
  %s1 = inlined_call_operand.vmem [shape: f32[2,4,4], index: 1, kind: input, shape index: {}]
  %s2 = inlined_call_operand.vmem [shape: f32[2,4,16,16], index: 2, kind: output, shape index: {}]
  %s3 = sld [smem:[#allocation0]]
  $region45: #{backproject_depth.1} parent=0
    _
  %s5 = ssub.s32 1, %s3
  %s6 = scalar_select 0, %s5, %s3
  $region1: #{backproject_depth.1} parent=0
    #allocation2 [shape = 'u8[16384]{0}', space=vmem, size = 0x4000, scoped, tag = 'input window, operand 0']
    #allocation3 [shape = 's32[2]{0}', space=sflag, size = 0x8, scoped, tag = 'scoped memory for backproject_depth.1']
    %7 = vsyncpa [#allocation3], 0
    %s8 = scalar_lea.sflag [#allocation3], 1
    %9 = vsyncpa %s8, 0
    loop: start=0, step=1, limit=4
    $region2: #{backproject_depth.1} parent=1 // loop_pre_header
      _
    $region3: #{backproject_depth.1} parent=1 // loop_header
      %s11 = sphi 0, %s15
      %p12 = scmp.ge.s32.totalorder %s11, 4
      %s18 = sphi 0, %s30
      %s19 = sphi 0, %s26
      %s20 = sphi 0, %s18
      %s21 = sphi 0, %s19
      %s22 = sphi 0, %s20
      %s23 = sphi 0, %s21
      %s35 = sphi 0, %s37
      %s38 = sphi 0, %s35
      %s39 = sphi 0, %s38
      %s55 = sphi 0, %s39
      %s61 = sphi 0, %s63
      %s64 = sphi 0, %s61
      %s65 = sphi 0, %s64
      %s81 = sphi 0, %s65
      %s89 = sphi 0, %s91
      %s92 = sphi 0, %s89
      %s93 = sphi 0, %s92
      %s109 = sphi 0, %s93
    $region4: #{backproject_depth.1} parent=1 // loop_header_branch
      %14 = sbr.rel (%p12) target = $region8
    $region5: #{backproject_depth.1} parent=1 // loop_body
      %s16 = ssub.s32 %s11, 1
      %s17 = ssub.s32 %s11, 2
      %s24 = sadd.s32 1, %s19
      %p25 = scmp.ge.s32.totalorder %s24, 1
      %s26 = scalar_select %p25, 0, %s24
      %s27 = sadd.s32 1, %s18
      %s28 = scalar_select %p25, %s27, %s18
      %p29 = scmp.ge.s32.totalorder %s28, 2
      %s30 = scalar_select %p29, 0, %s28
      %s31 = ssub.s32 %s18, %s30
      %s32 = ssub.s32 %s19, %s26
      %s33 = sor.u32 %s31, %s32
      %p34 = scmp.eq.s32.totalorder %s33, 0
      %s36 = sadd.s32 %s35, 1
      %s37 = scalar_select %p34, %s35, %s36
      %p40 = pneg %p34
      %p41 = scmp.eq.s32.totalorder %s11, 1
      %p42 = por %p40, %p41
      %p43 = scmp.ne.s32.totalorder %s35, %s38
      %p44 = scmp.eq.s32.totalorder %s11, 0
      %p45 = por %p43, %p44
      %p46 = scmp.ne.s32.totalorder %s35, %s38
      %p47 = scmp.eq.s32.totalorder %s16, 1
      %p48 = por %p46, %p47
      %p49 = scmp.ne.s32.totalorder %s38, %s39
      %p50 = scmp.eq.s32.totalorder %s16, 0
      %p51 = por %p49, %p50
      %p52 = scmp.ne.s32.totalorder %s38, %s39
      %p53 = scmp.eq.s32.totalorder %s17, 1
      %p54 = por %p52, %p53
      %p56 = scmp.ne.s32.totalorder %s39, %s55
      %p57 = scmp.eq.s32.totalorder %s17, 0
      %p58 = por %p56, %p57
      %s59 = ssub.s32 %s18, %s30
      %p60 = scmp.eq.s32.totalorder %s59, 0
      %s62 = sadd.s32 %s61, 1
      %s63 = scalar_select %p60, %s61, %s62
      %p66 = pneg %p60
      %p67 = scmp.eq.s32.totalorder %s11, 1
      %p68 = por %p66, %p67
      %p69 = scmp.ne.s32.totalorder %s61, %s64
      %p70 = scmp.eq.s32.totalorder %s11, 0
      %p71 = por %p69, %p70
      %p72 = scmp.ne.s32.totalorder %s61, %s64
      %p73 = scmp.eq.s32.totalorder %s16, 1
      %p74 = por %p72, %p73
      %p75 = scmp.ne.s32.totalorder %s64, %s65
      %p76 = scmp.eq.s32.totalorder %s16, 0
      %p77 = por %p75, %p76
      %p78 = scmp.ne.s32.totalorder %s64, %s65
      %p79 = scmp.eq.s32.totalorder %s17, 1
      %p80 = por %p78, %p79
      %p82 = scmp.ne.s32.totalorder %s65, %s81
      %p83 = scmp.eq.s32.totalorder %s17, 0
      %p84 = por %p82, %p83
      %s85 = ssub.s32 %s18, %s30
      %s86 = ssub.s32 %s19, %s26
      %s87 = sor.u32 %s85, %s86
      %p88 = scmp.eq.s32.totalorder %s87, 0
      %s90 = sadd.s32 %s89, 1
      %s91 = scalar_select %p88, %s89, %s90
      %p94 = pneg %p88
      %p95 = scmp.eq.s32.totalorder %s11, 1
      %p96 = por %p94, %p95
      %p97 = scmp.ne.s32.totalorder %s89, %s92
      %p98 = scmp.eq.s32.totalorder %s11, 0
      %p99 = por %p97, %p98
      %p100 = scmp.ne.s32.totalorder %s89, %s92
      %p101 = scmp.eq.s32.totalorder %s16, 1
      %p102 = por %p100, %p101
      %p103 = scmp.ne.s32.totalorder %s92, %s93
      %p104 = scmp.eq.s32.totalorder %s16, 0
      %p105 = por %p103, %p104
      %p106 = scmp.ne.s32.totalorder %s92, %s93
      %p107 = scmp.eq.s32.totalorder %s17, 1
      %p108 = por %p106, %p107
      %p110 = scmp.ne.s32.totalorder %s93, %s109
      %p111 = scmp.eq.s32.totalorder %s17, 0
      %p112 = por %p110, %p111
      %p113 = scmp.le.s32.totalorder 1, %s11
      %p114 = scmp.lt.s32.totalorder %s11, 3
      %p115 = pnand %p113, %p114
      %p116 = pneg %p115
      // Predicated region
      $region9: #{backproject_depth.1} parent=5 // pred_check
        _
      $region10: #{backproject_depth.1} parent=5 // pred_check_branch
        %118 = sbr.rel (%p115) target = $region12
      $region11: #{backproject_depth.1} parent=5 // pred_region
        %s119 = ssub.s32 %s11, 1
      $region12: #{backproject_depth.1} parent=5 // pred_fallthru
        _
      %p120 = scmp.lt.s32.totalorder %s11, 2
      // Predicated region
      $region13: #{backproject_depth.1} parent=5 // pred_check
        %p121 = pneg %p120
      $region14: #{backproject_depth.1} parent=5 // pred_check_branch
        %123 = sbr.rel (%p121) target = $region16
      $region15: #{backproject_depth.1} parent=5 // pred_region
        // Predicated region
        $region17: #{backproject_depth.1} parent=15 // pred_check
          %p124 = pneg %p45
        $region18: #{backproject_depth.1} parent=15 // pred_check_branch
          %126 = sbr.rel (%p124) target = $region20
        $region19: #{backproject_depth.1} parent=15 // pred_region
          %s127 = sand.u32 %s35, 1
          %s128 = scalar_lea.sflag [#allocation3], %s127
          %s129 = sand.u32 %s35, 1
          %s130 = smul.addr %s129, 16
          %s131 = scalar_lea.vmem [#allocation2], %s130
          %s132 = smul.u32 2, %s19
          %134 = vsyncadd %s128, 0
          %s135 = smul.addr %s18, 2
          %s136 = sadd.s32 %s132, %s135
          %s137 = smul.addr %s136, 8
          %s138 = scalar_lea.hbm %s0, %s137
          %s139 = sshll.u32 %s138, 4
          %s140 = int_to_ptr.hbm [resolvable:$true] %s139
          %s141 = sshll.u32 %s131, 4
          %s142 = int_to_ptr.vmem [resolvable:$true] %s141
          %147 = dma.hbm_to_vmem [thread:$0]  %s140, 256, %s142, %s128, 128, 128, 8
        $region20: #{backproject_depth.1} parent=15 // pred_fallthru
          _
        // Predicated region
        $region21: #{backproject_depth.1} parent=15 // pred_check
          %p148 = pneg %p71
        $region22: #{backproject_depth.1} parent=15 // pred_check_branch
          %150 = sbr.rel (%p148) target = $region24
        $region23: #{backproject_depth.1} parent=15 // pred_region
          %p151 = scmp.lt.s32.totalorder %s18, 1
          %s152 = scalar_select %p151, %s18, 1
          %s153 = smul.addr %s152, 4
          %s154 = scalar_lea.vmem %s1, %s153
        $region24: #{backproject_depth.1} parent=15 // pred_fallthru
          _
      $region16: #{backproject_depth.1} parent=5 // pred_fallthru
        _
      %p155 = scmp.le.s32.totalorder 1, %s11
      %p156 = scmp.lt.s32.totalorder %s11, 3
      %p157 = pnand %p155, %p156
      %p158 = pneg %p157
      // Predicated region
      $region25: #{backproject_depth.1} parent=5 // pred_check
        _
      $region26: #{backproject_depth.1} parent=5 // pred_check_branch
        %160 = sbr.rel (%p157) target = $region28
      $region27: #{backproject_depth.1} parent=5 // pred_region
        %s161 = ssub.s32 %s11, 1
        %s162 = sand.u32 %s38, 1
        %s163 = scalar_lea.sflag [#allocation3], %s162
        %s164 = sand.u32 %s38, 1
        %s165 = smul.addr %s164, 16
        %s166 = scalar_lea.vmem [#allocation2], %s165
        // Predicated region
        $region29: #{backproject_depth.1} parent=27 // pred_check
          %p167 = pneg %p51
        $region30: #{backproject_depth.1} parent=27 // pred_check_branch
          %169 = sbr.rel (%p167) target = $region32
        $region31: #{backproject_depth.1} parent=27 // pred_region
          %171 = dma.done %s163, 256
        $region32: #{backproject_depth.1} parent=27 // pred_fallthru
          _
        %s172 = sand.u32 %s38, 1
        %s173 = scalar_lea.sflag [#allocation3], %s172
        %s174 = sand.u32 %s38, 1
        %s175 = smul.addr %s174, 16
        %s176 = scalar_lea.vmem [#allocation2], %s175
        %p177 = pneg %p51
        %p178 = pneg %p48
        %p179 = scmp.lt.s32.totalorder %s20, 1
        %s180 = scalar_select %p179, %s20, 1
        %s181 = smul.addr %s180, 4
        %s182 = scalar_lea.vmem %s1, %s181
        %p183 = pneg %p77
        %p184 = pneg %p74
        %p185 = pneg %p105
        %p186 = pneg %p102
        %s187 = smul.u32 2, %s21
        %p188 = scmp.lt.s32.totalorder %s20, 1
        %s189 = scalar_select %p188, %s20, 1
        %p190 = scmp.lt.s32.totalorder %s187, 1
        %s191 = scalar_select %p190, %s187, 1
        %s192 = smul.addr %s189, 8
        %s193 = sadd.s32 %s191, %s192
        %s194 = smul.addr %s193, 8
        %s195 = scalar_lea.vmem %s2, %s194
        %s196 = smul.u32 2, %s21
        %p197 = scmp.lt.s32.totalorder %s20, 1
        %s198 = scalar_select %p197, %s20, 1
        %s199 = smul.addr %s198, 4
        %s200 = scalar_lea.vmem %s1, %s199
        %s201 = smul.u32 2, %s21
        %p202 = scmp.lt.s32.totalorder %s20, 1
        %s203 = scalar_select %p202, %s20, 1
        %p204 = scmp.lt.s32.totalorder %s201, 1
        %s205 = scalar_select %p204, %s201, 1
        %s206 = smul.addr %s203, 8
        %s207 = sadd.s32 %s205, %s206
        %s208 = smul.addr %s207, 8
        %s209 = scalar_lea.vmem %s2, %s208
        %s210 = smul.u32 2, %s21
        %v211 = vld [vmem:[%s166] sm:$0xff]
        %v212 = vld [vmem:[%s166 + $0x8] sm:$0xff]
        %v213 = vld [vmem:[%s200] sm:$0xf]
        %v215 = vrot.slane %v213, 1
        %v216 = vrot.slane %v213, 2
        %v217 = vrot.slane %v213, 3
        %v218 = vlaneseq
        %v219 = vand.u32 %v218, 127
        %v220 = vcvt.s32.f32 %v219
        %v221 = vlaneseq
        %v222 = vshrl.u32 %v221, 7
        %v223 = vadd.s32 %v222, 8
        %v224 = vcvt.s32.f32 %v222
        %v225 = vcvt.s32.f32 %v223
        %s226 = smul.u32 %s21, 16
        %s227 = scvt.s32.f32 %s226
        %v228 = vstv %s227
        %v229 = vadd.f32 %v224, %v228
        %v230 = vadd.f32 %v225, %v228
        %v231 = vperm.slane %v213, 0
        %v232 = vperm.slane %v215, 0
        %v233 = vperm.slane %v216, 0
        %v234 = vperm.slane %v217, 0
        %235 = vset.pattern.permute.xlu0 0
        %236 = vperm.xlu0 %235, %v231
        %v237 = vpop.permute.xlu0 %236
        %239 = vset.pattern.permute.xlu0 0
        %240 = vperm.xlu0 %239, %v232
        %v241 = vpop.permute.xlu0 %240
        %243 = vset.pattern.permute.xlu0 0
        %244 = vperm.xlu0 %243, %v233
        %v245 = vpop.permute.xlu0 %244
        %247 = vset.pattern.permute.xlu0 0
        %248 = vperm.xlu0 %247, %v234
        %v249 = vpop.permute.xlu0 %248
        %v251 = vmul.f32 %v237, %v220
        %v252 = vmul.f32 %v241, %v220
        %v253 = vmul.f32 %v245, %v220
        %v254 = vmul.f32 %v249, %v220
        %255 = vset.pattern.permute.xlu0 1
        %256 = vperm.xlu0 %255, %v231
        %v257 = vpop.permute.xlu0 %256
        %259 = vset.pattern.permute.xlu0 1
        %260 = vperm.xlu0 %259, %v232
        %v261 = vpop.permute.xlu0 %260
        %263 = vset.pattern.permute.xlu0 1
        %264 = vperm.xlu0 %263, %v233
        %v265 = vpop.permute.xlu0 %264
        %267 = vset.pattern.permute.xlu0 1
        %268 = vperm.xlu0 %267, %v234
        %v269 = vpop.permute.xlu0 %268
        %v271 = vmul.f32 %v257, %v229
        %v272 = vmul.f32 %v257, %v230
        %v273 = vmul.f32 %v261, %v229
        %v274 = vmul.f32 %v261, %v230
        %v275 = vmul.f32 %v265, %v229
        %v276 = vmul.f32 %v265, %v230
        %v277 = vmul.f32 %v269, %v229
        %v278 = vmul.f32 %v269, %v230
        %v279 = vadd.f32 %v251, %v271
        %v280 = vadd.f32 %v251, %v272
        %v281 = vadd.f32 %v252, %v273
        %v282 = vadd.f32 %v252, %v274
        %v283 = vadd.f32 %v253, %v275
        %v284 = vadd.f32 %v253, %v276
        %v285 = vadd.f32 %v254, %v277
        %v286 = vadd.f32 %v254, %v278
        %287 = vset.pattern.permute.xlu0 2
        %288 = vperm.xlu0 %287, %v231
        %v289 = vpop.permute.xlu0 %288
        %291 = vset.pattern.permute.xlu0 2
        %292 = vperm.xlu0 %291, %v232
        %v293 = vpop.permute.xlu0 %292
        %295 = vset.pattern.permute.xlu0 2
        %296 = vperm.xlu0 %295, %v233
        %v297 = vpop.permute.xlu0 %296
        %299 = vset.pattern.permute.xlu0 2
        %300 = vperm.xlu0 %299, %v234
        %v301 = vpop.permute.xlu0 %300
        %v303 = vadd.f32 %v279, %v289
        %v304 = vadd.f32 %v280, %v289
        %v305 = vadd.f32 %v281, %v293
        %v306 = vadd.f32 %v282, %v293
        %v307 = vadd.f32 %v283, %v297
        %v308 = vadd.f32 %v284, %v297
        %v309 = vadd.f32 %v285, %v301
        %v310 = vadd.f32 %v286, %v301
        %v311 = vmul.f32 %v211, %v303
        %v312 = vmul.f32 %v212, %v304
        %v313 = vmul.f32 %v211, %v305
        %v314 = vmul.f32 %v212, %v306
        %v315 = vmul.f32 %v211, %v307
        %v316 = vmul.f32 %v212, %v308
        %v317 = vmul.f32 %v211, %v309
        %v318 = vmul.f32 %v212, %v310
        %319 = vset.pattern.permute.xlu0 3
        %320 = vperm.xlu0 %319, %v231
        %v321 = vpop.permute.xlu0 %320
        %323 = vset.pattern.permute.xlu0 3
        %324 = vperm.xlu0 %323, %v232
        %v325 = vpop.permute.xlu0 %324
        %327 = vset.pattern.permute.xlu0 3
        %328 = vperm.xlu0 %327, %v233
        %v329 = vpop.permute.xlu0 %328
        %331 = vset.pattern.permute.xlu0 3
        %332 = vperm.xlu0 %331, %v234
        %v333 = vpop.permute.xlu0 %332
        %v335 = vadd.f32 %v311, %v321
        %v336 = vadd.f32 %v312, %v321
        %v337 = vadd.f32 %v313, %v325
        %v338 = vadd.f32 %v314, %v325
        %v339 = vadd.f32 %v315, %v329
        %v340 = vadd.f32 %v316, %v329
        %v341 = vadd.f32 %v317, %v333
        %v342 = vadd.f32 %v318, %v333
        %vm343 = vcmask 130048
        %344 = vst.msk [vmem:[%s209] sm:$0xff] %vm343, %v335
        %345 = vst.msk [vmem:[%s209 + $0x8] sm:$0xff] %vm343, %v336
        %346 = vst.msk [vmem:[%s209 + $0x10] sm:$0xff] %vm343, %v337
        %347 = vst.msk [vmem:[%s209 + $0x18] sm:$0xff] %vm343, %v338
        %348 = vst.msk [vmem:[%s209 + $0x20] sm:$0xff] %vm343, %v339
        %349 = vst.msk [vmem:[%s209 + $0x28] sm:$0xff] %vm343, %v340
        %350 = vst.msk [vmem:[%s209 + $0x30] sm:$0xff] %vm343, %v341
        %351 = vst.msk [vmem:[%s209 + $0x38] sm:$0xff] %vm343, %v342
        %s352 = smul.u32 2, %s21
        %p353 = scmp.lt.s32.totalorder %s20, 1
        %s354 = scalar_select %p353, %s20, 1
        %p355 = scmp.lt.s32.totalorder %s352, 1
        %s356 = scalar_select %p355, %s352, 1
        %s357 = smul.addr %s354, 8
        %s358 = sadd.s32 %s356, %s357
        %s359 = smul.addr %s358, 8
        %s360 = scalar_lea.vmem %s2, %s359
        // Predicated region
        $region33: #{backproject_depth.1} parent=27 // pred_check
          %p361 = pneg %p102
        $region34: #{backproject_depth.1} parent=27 // pred_check_branch
          %363 = sbr.rel (%p361) target = $region36
        $region35: #{backproject_depth.1} parent=27 // pred_region
          %s364 = smul.u32 2, %s21
        $region36: #{backproject_depth.1} parent=27 // pred_fallthru
          _
      $region28: #{backproject_depth.1} parent=5 // pred_fallthru
        _
      %p365 = scmp.le.s32.totalorder 2, %s11
      // Predicated region
      $region37: #{backproject_depth.1} parent=5 // pred_check
        %p366 = pneg %p365
      $region38: #{backproject_depth.1} parent=5 // pred_check_branch
        %368 = sbr.rel (%p366) target = $region40
      $region39: #{backproject_depth.1} parent=5 // pred_region
        %s369 = ssub.s32 %s11, 2
        // Predicated region
        $region41: #{backproject_depth.1} parent=39 // pred_check
          %p370 = pneg %p108
        $region42: #{backproject_depth.1} parent=39 // pred_check_branch
          %372 = sbr.rel (%p370) target = $region44
        $region43: #{backproject_depth.1} parent=39 // pred_region
          %s373 = smul.u32 2, %s23
          %p374 = scmp.lt.s32.totalorder %s22, 1
          %s375 = scalar_select %p374, %s22, 1
          %p376 = scmp.lt.s32.totalorder %s373, 1
          %s377 = scalar_select %p376, %s373, 1
          %s378 = smul.addr %s375, 8
          %s379 = sadd.s32 %s377, %s378
          %s380 = smul.addr %s379, 8
          %s381 = scalar_lea.vmem %s2, %s380
        $region44: #{backproject_depth.1} parent=39 // pred_fallthru
          _
      $region40: #{backproject_depth.1} parent=5 // pred_fallthru
        _
    $region6: #{backproject_depth.1} parent=1 // loop_footer
      %s15 = sadd.s32 1, %s11
    $region7: #{backproject_depth.1} parent=1 // loop_footer_branch
      %10 = sbr.rel target = $region3
    $region8: #{backproject_depth.1} parent=1 // loop_exit
      _
    %382 = vsyncpa [#allocation3], 1
    %s383 = scalar_lea.sflag [#allocation3], 1
    %384 = vsyncpa %s383, 1

</llo_original>
